<compile_context>
chip_gen: v5e
topology: v5e:2x2
jax: 0.10.0
libtpu: 0.0.40
codegen_flags: <defaults>
</compile_context>

<pallas_src>
import jax
import jax.numpy as jnp
from jax.experimental import pallas as pl
from jax.experimental.pallas import tpu as pltpu

LANE = 128  # TPU lane width


def mlp_kernel(x_ref,
               w1_ref, b1_ref,
               w2_ref, b2_ref,
               w3_ref, b3_ref,
               w4_ref, b4_ref,
               o_ref):
    # Layer 1: (TM, 128) @ (128, 256)  -- bf16 inputs, f32 accumulate
    h = jnp.dot(x_ref[...], w1_ref[...], preferred_element_type=jnp.float32)
    h = jnp.maximum(h + b1_ref[...], 0.0)
    # Layer 2: (TM, 256) @ (256, 128)
    h = jnp.dot(h.astype(jnp.bfloat16), w2_ref[...],
                preferred_element_type=jnp.float32)
    h = jnp.maximum(h + b2_ref[...], 0.0)
    # Layer 3: (TM, 128) @ (128, 64)
    h = jnp.dot(h.astype(jnp.bfloat16), w3_ref[...],
                preferred_element_type=jnp.float32)
    h = jnp.maximum(h + b3_ref[...], 0.0)
    # Output layer (lane-padded to 128 cols): (TM, 64) @ (64, 128)
    h = jnp.dot(h.astype(jnp.bfloat16), w4_ref[...],
                preferred_element_type=jnp.float32)
    o_ref[...] = (h + b4_ref[...]).astype(o_ref.dtype)


def mlp_forward(x, params, *, tm=128):
    """x: (B, input_size) float32. params: flat list [w1,b1,...,w4,b4] (f32).

    Weights are stored as (in_features, out_features) so the kernel computes
    y = x @ W + b (same math as PyTorch's x @ W.T + b).
    """
    B, K = x.shape
    w1, b1, w2, b2, w3, b3, w4, b4 = params
    out_size = w4.shape[1]

    # ---- host-side lane/tile padding ----
    K_pad = pl.cdiv(K, LANE) * LANE                     # 100 -> 128
    N_pad = pl.cdiv(out_size, LANE) * LANE              # 10  -> 128
    tm = min(tm, max(8, pl.cdiv(B, 8) * 8))             # don't over-tile tiny batches
    B_pad = pl.cdiv(B, tm) * tm

    x_p = jnp.zeros((B_pad, K_pad), jnp.bfloat16).at[:B, :K].set(
        x.astype(jnp.bfloat16))
    w1_p = jnp.zeros((K_pad, w1.shape[1]), jnp.bfloat16).at[:K, :].set(
        w1.astype(jnp.bfloat16))
    w2_b = w2.astype(jnp.bfloat16)
    w3_b = w3.astype(jnp.bfloat16)
    w4_p = jnp.zeros((w4.shape[0], N_pad), jnp.bfloat16).at[:, :out_size].set(
        w4.astype(jnp.bfloat16))
    b4_p = jnp.zeros((1, N_pad), jnp.float32).at[:, :out_size].set(b4)

    grid = (B_pad // tm,)

    def const_spec(arr):
        # Full-array block, constant index map: DMA'd once, VMEM-resident
        # across all grid steps.
        return pl.BlockSpec(arr.shape, lambda i: (0,) * arr.ndim)

    in_specs = [
        pl.BlockSpec((tm, K_pad), lambda i: (i, 0)),   # x tile
        const_spec(w1_p), const_spec(b1),
        const_spec(w2_b), const_spec(b2),
        const_spec(w3_b), const_spec(b3),
        const_spec(w4_p), const_spec(b4_p),
    ]
    out_specs = pl.BlockSpec((tm, N_pad), lambda i: (i, 0))

    flops = 2 * B_pad * (K_pad * w1.shape[1]
                         + w2.shape[0] * w2.shape[1]
                         + w3.shape[0] * w3.shape[1]
                         + w4.shape[0] * N_pad)
    operands = (x_p, w1_p, b1, w2_b, b2, w3_b, b3, w4_p, b4_p)
    bytes_accessed = sum(int(a.size) * a.dtype.itemsize for a in operands) \
        + B_pad * N_pad * 4

    out_padded = pl.pallas_call(
        mlp_kernel,
        out_shape=jax.ShapeDtypeStruct((B_pad, N_pad), jnp.float32),
        grid=grid,
        in_specs=in_specs,
        out_specs=out_specs,
        compiler_params=pltpu.CompilerParams(
            dimension_semantics=("parallel",)),
        cost_estimate=pl.CostEstimate(
            flops=flops, transcendentals=0, bytes_accessed=bytes_accessed),
    )(*operands)

    return out_padded[:B, :out_size]


def init_mlp_params(key, input_size=100, hidden_sizes=(256, 128, 64),
                    output_size=10):
    """Init mimicking PyTorch nn.Linear default (uniform +/- 1/sqrt(fan_in)).

    Weights stored as (in_features, out_features); biases as (1, out_features).
    """
    sizes = [input_size] + list(hidden_sizes) + [output_size]
    params = []
    for i in range(len(sizes) - 1):
        fan_in, fan_out = sizes[i], sizes[i + 1]
        key, kw, kb = jax.random.split(key, 3)
        bound = 1.0 / jnp.sqrt(jnp.float32(fan_in))
        w = jax.random.uniform(kw, (fan_in, fan_out), jnp.float32, -bound, bound)
        b = jax.random.uniform(kb, (1, fan_out), jnp.float32, -bound, bound)
        params += [w, b]
    return params


def mlp_reference_f32(x, params):
    """Pure-JAX f32 reference of the forward pass."""
    h = x
    n_layers = len(params) // 2
    for i in range(n_layers):
        w, b = params[2 * i], params[2 * i + 1]
        h = h @ w + b
        if i < n_layers - 1:
            h = jnp.maximum(h, 0.0)
    return h


def mlp_reference_bf16(x, params):
    """Pure-JAX reference emulating the kernel's bf16-in / f32-accumulate math."""
    h = x.astype(jnp.bfloat16)
    n_layers = len(params) // 2
    for i in range(n_layers):
        w, b = params[2 * i], params[2 * i + 1]
        h = jnp.dot(h, w.astype(jnp.bfloat16),
                    preferred_element_type=jnp.float32) + b
        if i < n_layers - 1:
            h = jnp.maximum(h, 0.0).astype(jnp.bfloat16)
    return h


if __name__ == "__main__":
    key = jax.random.PRNGKey(0)
    key, kx = jax.random.split(key)

    batch = 256          # 2 grid steps at TM=128 to exercise the batch tiling
    input_size = 100
    x = jax.random.normal(kx, (batch, input_size), jnp.float32)

    params = init_mlp_params(key, input_size=input_size,
                             hidden_sizes=(256, 128, 64), output_size=10)

    out = jax.block_until_ready(mlp_forward(x, params, tm=128))
    assert out.shape == (batch, 10)

    # Tight check against a pure-JAX emulation of the exact bf16/f32 math.
    ref_bf16 = mlp_reference_bf16(x, params)
    assert jnp.allclose(out, ref_bf16, atol=2e-3, rtol=2e-3), \
        "mismatch vs bf16-emulated reference"

    # Loose check against the full-f32 reference (bf16 inputs change numerics).
    ref_f32 = mlp_reference_f32(x, params)
    assert jnp.allclose(out, ref_f32, atol=5e-2, rtol=5e-2), \
        "mismatch vs f32 reference"

    print("KERNEL_OK")
</pallas_src>

<mosaic_0001>
module attributes {stable_mosaic.version = 11 : i64} {
  func.func @mlp_kernel(%arg0: i32, %arg1: memref<128x128xbf16, #tpu.memory_space<vmem>>, %arg2: memref<128x256xbf16, #tpu.memory_space<vmem>>, %arg3: memref<1x256xf32, #tpu.memory_space<vmem>>, %arg4: memref<256x128xbf16, #tpu.memory_space<vmem>>, %arg5: memref<1x128xf32, #tpu.memory_space<vmem>>, %arg6: memref<128x64xbf16, #tpu.memory_space<vmem>>, %arg7: memref<1x64xf32, #tpu.memory_space<vmem>>, %arg8: memref<64x128xbf16, #tpu.memory_space<vmem>>, %arg9: memref<1x128xf32, #tpu.memory_space<vmem>>, %arg10: memref<128x128xf32, #tpu.memory_space<vmem>>) attributes {dimension_semantics = [#tpu.dimension_semantics<parallel>], iteration_bounds = array<i64: 2>, scalar_prefetch = 0 : i64, scratch_operands = 0 : i64, tpu.core_type = #tpu.core_type<tc>, window_params = [{transform_indices = @transform_0, window_bounds = array<i64: 128, 128>}, {pipeline_mode = #tpu.pipeline_mode<synchronous>, transform_indices = @transform_1, window_bounds = array<i64: 128, 256>}, {pipeline_mode = #tpu.pipeline_mode<synchronous>, transform_indices = @transform_2, window_bounds = array<i64: 1, 256>}, {pipeline_mode = #tpu.pipeline_mode<synchronous>, transform_indices = @transform_3, window_bounds = array<i64: 256, 128>}, {pipeline_mode = #tpu.pipeline_mode<synchronous>, transform_indices = @transform_4, window_bounds = array<i64: 1, 128>}, {pipeline_mode = #tpu.pipeline_mode<synchronous>, transform_indices = @transform_5, window_bounds = array<i64: 128, 64>}, {pipeline_mode = #tpu.pipeline_mode<synchronous>, transform_indices = @transform_6, window_bounds = array<i64: 1, 64>}, {pipeline_mode = #tpu.pipeline_mode<synchronous>, transform_indices = @transform_7, window_bounds = array<i64: 64, 128>}, {pipeline_mode = #tpu.pipeline_mode<synchronous>, transform_indices = @transform_8, window_bounds = array<i64: 1, 128>}, {transform_indices = @transform_9, window_bounds = array<i64: 128, 128>}]} {
    %c0 = arith.constant 0 : index
    %c0_0 = arith.constant 0 : index
    %0 = vector.load %arg1[%c0, %c0_0] : memref<128x128xbf16, #tpu.memory_space<vmem>>, vector<128x128xbf16>
    %c0_1 = arith.constant 0 : index
    %c0_2 = arith.constant 0 : index
    %1 = vector.load %arg2[%c0_1, %c0_2] : memref<128x256xbf16, #tpu.memory_space<vmem>>, vector<128x256xbf16>
    %cst = arith.constant dense<0.000000e+00> : vector<128x256xf32>
    %2 = tpu.matmul %0, %1, %cst {dimension_numbers = #tpu.dot_dimension_numbers<[1], [0], [0], [1], [0, 0, 1, 1], [], []>} : vector<128x128xbf16>, vector<128x256xbf16>, vector<128x256xf32> -> vector<128x256xf32>
    %c0_3 = arith.constant 0 : index
    %c0_4 = arith.constant 0 : index
    %3 = vector.load %arg3[%c0_3, %c0_4] : memref<1x256xf32, #tpu.memory_space<vmem>>, vector<1x256xf32>
    %4 = vector.broadcast %3 : vector<1x256xf32> to vector<128x256xf32>
    %5 = arith.addf %2, %4 : vector<128x256xf32>
    %cst_5 = arith.constant 0.000000e+00 : f32
    %6 = vector.broadcast %cst_5 : f32 to vector<128x256xf32>
    %7 = arith.maximumf %5, %6 : vector<128x256xf32>
    %8 = arith.truncf %7 : vector<128x256xf32> to vector<128x256xbf16>
    %c0_6 = arith.constant 0 : index
    %c0_7 = arith.constant 0 : index
    %9 = vector.load %arg4[%c0_6, %c0_7] : memref<256x128xbf16, #tpu.memory_space<vmem>>, vector<256x128xbf16>
    %cst_8 = arith.constant dense<0.000000e+00> : vector<128x128xf32>
    %10 = tpu.matmul %8, %9, %cst_8 {dimension_numbers = #tpu.dot_dimension_numbers<[1], [0], [0], [1], [0, 0, 1, 1], [], []>} : vector<128x256xbf16>, vector<256x128xbf16>, vector<128x128xf32> -> vector<128x128xf32>
    %c0_9 = arith.constant 0 : index
    %c0_10 = arith.constant 0 : index
    %11 = vector.load %arg5[%c0_9, %c0_10] : memref<1x128xf32, #tpu.memory_space<vmem>>, vector<1x128xf32>
    %12 = vector.broadcast %11 : vector<1x128xf32> to vector<128x128xf32>
    %13 = arith.addf %10, %12 : vector<128x128xf32>
    %cst_11 = arith.constant 0.000000e+00 : f32
    %14 = vector.broadcast %cst_11 : f32 to vector<128x128xf32>
    %15 = arith.maximumf %13, %14 : vector<128x128xf32>
    %16 = arith.truncf %15 : vector<128x128xf32> to vector<128x128xbf16>
    %c0_12 = arith.constant 0 : index
    %c0_13 = arith.constant 0 : index
    %17 = vector.load %arg6[%c0_12, %c0_13] : memref<128x64xbf16, #tpu.memory_space<vmem>>, vector<128x64xbf16>
    %cst_14 = arith.constant dense<0.000000e+00> : vector<128x64xf32>
    %18 = tpu.matmul %16, %17, %cst_14 {dimension_numbers = #tpu.dot_dimension_numbers<[1], [0], [0], [1], [0, 0, 1, 1], [], []>} : vector<128x128xbf16>, vector<128x64xbf16>, vector<128x64xf32> -> vector<128x64xf32>
    %c0_15 = arith.constant 0 : index
    %c0_16 = arith.constant 0 : index
    %19 = vector.load %arg7[%c0_15, %c0_16] : memref<1x64xf32, #tpu.memory_space<vmem>>, vector<1x64xf32>
    %20 = vector.broadcast %19 : vector<1x64xf32> to vector<128x64xf32>
    %21 = arith.addf %18, %20 : vector<128x64xf32>
    %cst_17 = arith.constant 0.000000e+00 : f32
    %22 = vector.broadcast %cst_17 : f32 to vector<128x64xf32>
    %23 = arith.maximumf %21, %22 : vector<128x64xf32>
    %24 = arith.truncf %23 : vector<128x64xf32> to vector<128x64xbf16>
    %c0_18 = arith.constant 0 : index
    %c0_19 = arith.constant 0 : index
    %25 = vector.load %arg8[%c0_18, %c0_19] : memref<64x128xbf16, #tpu.memory_space<vmem>>, vector<64x128xbf16>
    %cst_20 = arith.constant dense<0.000000e+00> : vector<128x128xf32>
    %26 = tpu.matmul %24, %25, %cst_20 {dimension_numbers = #tpu.dot_dimension_numbers<[1], [0], [0], [1], [0, 0, 1, 1], [], []>} : vector<128x64xbf16>, vector<64x128xbf16>, vector<128x128xf32> -> vector<128x128xf32>
    %c0_21 = arith.constant 0 : index
    %c0_22 = arith.constant 0 : index
    %27 = vector.load %arg9[%c0_21, %c0_22] : memref<1x128xf32, #tpu.memory_space<vmem>>, vector<1x128xf32>
    %28 = vector.broadcast %27 : vector<1x128xf32> to vector<128x128xf32>
    %29 = arith.addf %26, %28 : vector<128x128xf32>
    %c0_23 = arith.constant 0 : index
    %c0_24 = arith.constant 0 : index
    %30 = vector.load %arg10[%c0_23, %c0_24] : memref<128x128xf32, #tpu.memory_space<vmem>>, vector<128x128xf32>
    tpu.vector_store %arg10[%c0_23, %c0_24], %29 {strides = array<i32>} : memref<128x128xf32, #tpu.memory_space<vmem>>, vector<128x128xf32>,
    return
  }
  func.func @transform_0(%arg0: i32) -> (i32, i32) {
    %c0_i32 = arith.constant 0 : i32
    %c0_i32_0 = arith.constant 0 : i32
    return %arg0, %c0_i32 : i32, i32
  }
  func.func @transform_1(%arg0: i32) -> (i32, i32) {
    %c0_i32 = arith.constant 0 : i32
    %c0_i32_0 = arith.constant 0 : i32
    %c0_i32_1 = arith.constant 0 : i32
    return %c0_i32, %c0_i32_0 : i32, i32
  }
  func.func @transform_2(%arg0: i32) -> (i32, i32) {
    %c0_i32 = arith.constant 0 : i32
    %c0_i32_0 = arith.constant 0 : i32
    %c0_i32_1 = arith.constant 0 : i32
    return %c0_i32, %c0_i32_0 : i32, i32
  }
  func.func @transform_3(%arg0: i32) -> (i32, i32) {
    %c0_i32 = arith.constant 0 : i32
    %c0_i32_0 = arith.constant 0 : i32
    %c0_i32_1 = arith.constant 0 : i32
    return %c0_i32, %c0_i32_0 : i32, i32
  }
  func.func @transform_4(%arg0: i32) -> (i32, i32) {
    %c0_i32 = arith.constant 0 : i32
    %c0_i32_0 = arith.constant 0 : i32
    %c0_i32_1 = arith.constant 0 : i32
    return %c0_i32, %c0_i32_0 : i32, i32
  }
  func.func @transform_5(%arg0: i32) -> (i32, i32) {
    %c0_i32 = arith.constant 0 : i32
    %c0_i32_0 = arith.constant 0 : i32
    %c0_i32_1 = arith.constant 0 : i32
    return %c0_i32, %c0_i32_0 : i32, i32
  }
  func.func @transform_6(%arg0: i32) -> (i32, i32) {
    %c0_i32 = arith.constant 0 : i32
    %c0_i32_0 = arith.constant 0 : i32
    %c0_i32_1 = arith.constant 0 : i32
    return %c0_i32, %c0_i32_0 : i32, i32
  }
  func.func @transform_7(%arg0: i32) -> (i32, i32) {
    %c0_i32 = arith.constant 0 : i32
    %c0_i32_0 = arith.constant 0 : i32
    %c0_i32_1 = arith.constant 0 : i32
    return %c0_i32, %c0_i32_0 : i32, i32
  }
  func.func @transform_8(%arg0: i32) -> (i32, i32) {
    %c0_i32 = arith.constant 0 : i32
    %c0_i32_0 = arith.constant 0 : i32
    %c0_i32_1 = arith.constant 0 : i32
    return %c0_i32, %c0_i32_0 : i32, i32
  }
  func.func @transform_9(%arg0: i32) -> (i32, i32) {
    %c0_i32 = arith.constant 0 : i32
    %c0_i32_0 = arith.constant 0 : i32
    return %arg0, %c0_i32 : i32, i32
  }
}

</mosaic_0001>

<llo_original>
// kernel: tpu_custom_call.1
$region0: #{tpu_custom_call.1}
  #allocation0 [shape = 'u32[]', space=smem, size = 0x4, offset = 0x4, fixed_abs, tag = 'smem constant byte address 0x4 - core index']
  #allocation1 [shape = 'u32[72,128]{1,0:T(1,128)}', space=vmem, size = 0x9000, scoped, tag = 'internal scratch']
  %s0 = inlined_call_operand.hbm [shape: bf16[256,128], index: 0, kind: input, shape index: {}]
  %s1 = inlined_call_operand.hbm [shape: bf16[128,256], index: 1, kind: input, shape index: {}]
  %s2 = inlined_call_operand.vmem [shape: f32[1,256], index: 2, kind: input, shape index: {}]
  %s3 = inlined_call_operand.hbm [shape: bf16[256,128], index: 3, kind: input, shape index: {}]
  %s4 = inlined_call_operand.vmem [shape: f32[1,128], index: 4, kind: input, shape index: {}]
  %s5 = inlined_call_operand.vmem [shape: bf16[128,64], index: 5, kind: input, shape index: {}]
  %s6 = inlined_call_operand.vmem [shape: f32[1,64], index: 6, kind: input, shape index: {}]
  %s7 = inlined_call_operand.vmem [shape: bf16[64,128], index: 7, kind: input, shape index: {}]
  %s8 = inlined_call_operand.vmem [shape: f32[1,128], index: 8, kind: input, shape index: {}]
  %s9 = inlined_call_operand.hbm [shape: f32[256,128], index: 9, kind: output, shape index: {}]
  %s10 = sld [smem:[#allocation0]]
  $region81: #{tpu_custom_call.1} parent=0
    _
  %s12 = ssub.s32 1, %s10
  %s13 = scalar_select 0, %s12, %s10
  $region1: #{tpu_custom_call.1} parent=0
    #allocation2 [shape = 'u8[65536]{0}', space=vmem, size = 0x10000, scoped, tag = 'input window, operand 0']
    #allocation3 [shape = 's32[2]{0}', space=sflag, size = 0x8, scoped, tag = 'scoped memory for tpu_custom_call.1']
    #allocation4 [shape = 's32[2]{0}', space=sflag, size = 0x8, scoped, tag = 'scoped memory for tpu_custom_call.1']
    #allocation5 [shape = 'u8[65536]{0}', space=vmem, size = 0x10000, scoped, tag = 'input window, operand 1, single buffered']
    #allocation6 [shape = 's32[1]{0}', space=sflag, size = 0x4, scoped, tag = 'scoped memory for tpu_custom_call.1']
    #allocation7 [shape = 'u8[65536]{0}', space=vmem, size = 0x10000, scoped, tag = 'input window, operand 3, single buffered']
    #allocation8 [shape = 'u8[131072]{0}', space=vmem, size = 0x20000, scoped, tag = 'output window, operand 0']
    %14 = vsyncpa [#allocation3], 0
    %s15 = scalar_lea.sflag [#allocation3], 1
    %16 = vsyncpa %s15, 0
    %17 = vsyncpa [#allocation6], 0
    %18 = vsyncpa [#allocation4], 0
    %s19 = scalar_lea.sflag [#allocation4], 1
    %20 = vsyncpa %s19, 0
    loop: start=0, step=1, limit=4
    $region2: #{tpu_custom_call.1} parent=1 // loop_pre_header
      _
    $region3: #{tpu_custom_call.1} parent=1 // loop_header
      %s22 = sphi 0, %s26
      %p23 = scmp.ge.s32.totalorder %s22, 4
      %s32 = sphi 0, %s34
      %s35 = sphi 0, %s32
      %s36 = sphi 0, %s35
      %s52 = sphi 0, %s36
      %s56 = sphi 0, %s56
      %s58 = sphi 0, %s56
      %s59 = sphi 0, %s58
      %s73 = sphi 0, %s59
      %s77 = sphi 0, %s77
      %s79 = sphi 0, %s77
      %s80 = sphi 0, %s79
      %s94 = sphi 0, %s80
      %s98 = sphi 0, %s98
      %s100 = sphi 0, %s98
      %s101 = sphi 0, %s100
      %s115 = sphi 0, %s101
      %s119 = sphi 0, %s119
      %s121 = sphi 0, %s119
      %s122 = sphi 0, %s121
      %s136 = sphi 0, %s122
      %s140 = sphi 0, %s140
      %s142 = sphi 0, %s140
      %s143 = sphi 0, %s142
      %s157 = sphi 0, %s143
      %s161 = sphi 0, %s161
      %s163 = sphi 0, %s161
      %s164 = sphi 0, %s163
      %s178 = sphi 0, %s164
      %s182 = sphi 0, %s182
      %s184 = sphi 0, %s182
      %s185 = sphi 0, %s184
      %s199 = sphi 0, %s185
      %s203 = sphi 0, %s203
      %s205 = sphi 0, %s203
      %s206 = sphi 0, %s205
      %s220 = sphi 0, %s206
      %s226 = sphi 0, %s228
      %s229 = sphi 0, %s226
      %s230 = sphi 0, %s229
      %s246 = sphi 0, %s230
    $region4: #{tpu_custom_call.1} parent=1 // loop_header_branch
      %25 = sbr.rel (%p23) target = $region8
    $region5: #{tpu_custom_call.1} parent=1 // loop_body
      %s27 = ssub.s32 %s22, 1
      %s28 = ssub.s32 %s22, 2
      %s29 = sadd.s32 %s22, 1
      %s30 = ssub.s32 %s22, %s29
      %p31 = scmp.eq.s32.totalorder %s30, 0
      %s33 = sadd.s32 %s32, 1
      %s34 = scalar_select %p31, %s32, %s33
      %p37 = pneg %p31
      %p38 = scmp.eq.s32.totalorder %s22, 1
      %p39 = por %p37, %p38
      %p40 = scmp.ne.s32.totalorder %s32, %s35
      %p41 = scmp.eq.s32.totalorder %s22, 0
      %p42 = por %p40, %p41
      %p43 = scmp.ne.s32.totalorder %s32, %s35
      %p44 = scmp.eq.s32.totalorder %s27, 1
      %p45 = por %p43, %p44
      %p46 = scmp.ne.s32.totalorder %s35, %s36
      %p47 = scmp.eq.s32.totalorder %s27, 0
      %p48 = por %p46, %p47
      %p49 = scmp.ne.s32.totalorder %s35, %s36
      %p50 = scmp.eq.s32.totalorder %s28, 1
      %p51 = por %p49, %p50
      %p53 = scmp.ne.s32.totalorder %s36, %s52
      %p54 = scmp.eq.s32.totalorder %s28, 0
      %p55 = por %p53, %p54
      %s57 = sadd.s32 %s56, 1
      %p60 = scmp.eq.s32.totalorder %s22, 1
      %p61 = scmp.ne.s32.totalorder %s56, %s58
      %p62 = scmp.eq.s32.totalorder %s22, 0
      %p63 = por %p61, %p62
      %p64 = scmp.ne.s32.totalorder %s56, %s58
      %p65 = scmp.eq.s32.totalorder %s27, 1
      %p66 = por %p64, %p65
      %p67 = scmp.ne.s32.totalorder %s58, %s59
      %p68 = scmp.eq.s32.totalorder %s27, 0
      %p69 = por %p67, %p68
      %p70 = scmp.ne.s32.totalorder %s58, %s59
      %p71 = scmp.eq.s32.totalorder %s28, 1
      %p72 = por %p70, %p71
      %p74 = scmp.ne.s32.totalorder %s59, %s73
      %p75 = scmp.eq.s32.totalorder %s28, 0
      %p76 = por %p74, %p75
      %s78 = sadd.s32 %s77, 1
      %p81 = scmp.eq.s32.totalorder %s22, 1
      %p82 = scmp.ne.s32.totalorder %s77, %s79
      %p83 = scmp.eq.s32.totalorder %s22, 0
      %p84 = por %p82, %p83
      %p85 = scmp.ne.s32.totalorder %s77, %s79
      %p86 = scmp.eq.s32.totalorder %s27, 1
      %p87 = por %p85, %p86
      %p88 = scmp.ne.s32.totalorder %s79, %s80
      %p89 = scmp.eq.s32.totalorder %s27, 0
      %p90 = por %p88, %p89
      %p91 = scmp.ne.s32.totalorder %s79, %s80
      %p92 = scmp.eq.s32.totalorder %s28, 1
      %p93 = por %p91, %p92
      %p95 = scmp.ne.s32.totalorder %s80, %s94
      %p96 = scmp.eq.s32.totalorder %s28, 0
      %p97 = por %p95, %p96
      %s99 = sadd.s32 %s98, 1
      %p102 = scmp.eq.s32.totalorder %s22, 1
      %p103 = scmp.ne.s32.totalorder %s98, %s100
      %p104 = scmp.eq.s32.totalorder %s22, 0
      %p105 = por %p103, %p104
      %p106 = scmp.ne.s32.totalorder %s98, %s100
      %p107 = scmp.eq.s32.totalorder %s27, 1
      %p108 = por %p106, %p107
      %p109 = scmp.ne.s32.totalorder %s100, %s101
      %p110 = scmp.eq.s32.totalorder %s27, 0
      %p111 = por %p109, %p110
      %p112 = scmp.ne.s32.totalorder %s100, %s101
      %p113 = scmp.eq.s32.totalorder %s28, 1
      %p114 = por %p112, %p113
      %p116 = scmp.ne.s32.totalorder %s101, %s115
      %p117 = scmp.eq.s32.totalorder %s28, 0
      %p118 = por %p116, %p117
      %s120 = sadd.s32 %s119, 1
      %p123 = scmp.eq.s32.totalorder %s22, 1
      %p124 = scmp.ne.s32.totalorder %s119, %s121
      %p125 = scmp.eq.s32.totalorder %s22, 0
      %p126 = por %p124, %p125
      %p127 = scmp.ne.s32.totalorder %s119, %s121
      %p128 = scmp.eq.s32.totalorder %s27, 1
      %p129 = por %p127, %p128
      %p130 = scmp.ne.s32.totalorder %s121, %s122
      %p131 = scmp.eq.s32.totalorder %s27, 0
      %p132 = por %p130, %p131
      %p133 = scmp.ne.s32.totalorder %s121, %s122
      %p134 = scmp.eq.s32.totalorder %s28, 1
      %p135 = por %p133, %p134
      %p137 = scmp.ne.s32.totalorder %s122, %s136
      %p138 = scmp.eq.s32.totalorder %s28, 0
      %p139 = por %p137, %p138
      %s141 = sadd.s32 %s140, 1
      %p144 = scmp.eq.s32.totalorder %s22, 1
      %p145 = scmp.ne.s32.totalorder %s140, %s142
      %p146 = scmp.eq.s32.totalorder %s22, 0
      %p147 = por %p145, %p146
      %p148 = scmp.ne.s32.totalorder %s140, %s142
      %p149 = scmp.eq.s32.totalorder %s27, 1
      %p150 = por %p148, %p149
      %p151 = scmp.ne.s32.totalorder %s142, %s143
      %p152 = scmp.eq.s32.totalorder %s27, 0
      %p153 = por %p151, %p152
      %p154 = scmp.ne.s32.totalorder %s142, %s143
      %p155 = scmp.eq.s32.totalorder %s28, 1
      %p156 = por %p154, %p155
      %p158 = scmp.ne.s32.totalorder %s143, %s157
      %p159 = scmp.eq.s32.totalorder %s28, 0
      %p160 = por %p158, %p159
      %s162 = sadd.s32 %s161, 1
      %p165 = scmp.eq.s32.totalorder %s22, 1
      %p166 = scmp.ne.s32.totalorder %s161, %s163
      %p167 = scmp.eq.s32.totalorder %s22, 0
      %p168 = por %p166, %p167
      %p169 = scmp.ne.s32.totalorder %s161, %s163
      %p170 = scmp.eq.s32.totalorder %s27, 1
      %p171 = por %p169, %p170
      %p172 = scmp.ne.s32.totalorder %s163, %s164
      %p173 = scmp.eq.s32.totalorder %s27, 0
      %p174 = por %p172, %p173
      %p175 = scmp.ne.s32.totalorder %s163, %s164
      %p176 = scmp.eq.s32.totalorder %s28, 1
      %p177 = por %p175, %p176
      %p179 = scmp.ne.s32.totalorder %s164, %s178
      %p180 = scmp.eq.s32.totalorder %s28, 0
      %p181 = por %p179, %p180
      %s183 = sadd.s32 %s182, 1
      %p186 = scmp.eq.s32.totalorder %s22, 1
      %p187 = scmp.ne.s32.totalorder %s182, %s184
      %p188 = scmp.eq.s32.totalorder %s22, 0
      %p189 = por %p187, %p188
      %p190 = scmp.ne.s32.totalorder %s182, %s184
      %p191 = scmp.eq.s32.totalorder %s27, 1
      %p192 = por %p190, %p191
      %p193 = scmp.ne.s32.totalorder %s184, %s185
      %p194 = scmp.eq.s32.totalorder %s27, 0
      %p195 = por %p193, %p194
      %p196 = scmp.ne.s32.totalorder %s184, %s185
      %p197 = scmp.eq.s32.totalorder %s28, 1
      %p198 = por %p196, %p197
      %p200 = scmp.ne.s32.totalorder %s185, %s199
      %p201 = scmp.eq.s32.totalorder %s28, 0
      %p202 = por %p200, %p201
      %s204 = sadd.s32 %s203, 1
      %p207 = scmp.eq.s32.totalorder %s22, 1
      %p208 = scmp.ne.s32.totalorder %s203, %s205
      %p209 = scmp.eq.s32.totalorder %s22, 0
      %p210 = por %p208, %p209
      %p211 = scmp.ne.s32.totalorder %s203, %s205
      %p212 = scmp.eq.s32.totalorder %s27, 1
      %p213 = por %p211, %p212
      %p214 = scmp.ne.s32.totalorder %s205, %s206
      %p215 = scmp.eq.s32.totalorder %s27, 0
      %p216 = por %p214, %p215
      %p217 = scmp.ne.s32.totalorder %s205, %s206
      %p218 = scmp.eq.s32.totalorder %s28, 1
      %p219 = por %p217, %p218
      %p221 = scmp.ne.s32.totalorder %s206, %s220
      %p222 = scmp.eq.s32.totalorder %s28, 0
      %p223 = por %p221, %p222
      %s224 = ssub.s32 %s22, %s29
      %p225 = scmp.eq.s32.totalorder %s224, 0
      %s227 = sadd.s32 %s226, 1
      %s228 = scalar_select %p225, %s226, %s227
      %p231 = pneg %p225
      %p232 = scmp.eq.s32.totalorder %s22, 1
      %p233 = por %p231, %p232
      %p234 = scmp.ne.s32.totalorder %s226, %s229
      %p235 = scmp.eq.s32.totalorder %s22, 0
      %p236 = por %p234, %p235
      %p237 = scmp.ne.s32.totalorder %s226, %s229
      %p238 = scmp.eq.s32.totalorder %s27, 1
      %p239 = por %p237, %p238
      %p240 = scmp.ne.s32.totalorder %s229, %s230
      %p241 = scmp.eq.s32.totalorder %s27, 0
      %p242 = por %p240, %p241
      %p243 = scmp.ne.s32.totalorder %s229, %s230
      %p244 = scmp.eq.s32.totalorder %s28, 1
      %p245 = por %p243, %p244
      %p247 = scmp.ne.s32.totalorder %s230, %s246
      %p248 = scmp.eq.s32.totalorder %s28, 0
      %p249 = por %p247, %p248
      %p250 = scmp.le.s32.totalorder 1, %s22
      %p251 = scmp.lt.s32.totalorder %s22, 3
      %p252 = pnand %p250, %p251
      %p253 = pneg %p252
      // Predicated region
      $region9: #{tpu_custom_call.1} parent=5 // pred_check
        _
      $region10: #{tpu_custom_call.1} parent=5 // pred_check_branch
        %255 = sbr.rel (%p252) target = $region12
      $region11: #{tpu_custom_call.1} parent=5 // pred_region
        %s256 = ssub.s32 %s22, 1
        // Predicated region
        $region13: #{tpu_custom_call.1} parent=11 // pred_check
          %p257 = pneg %p69
        $region14: #{tpu_custom_call.1} parent=11 // pred_check_branch
          %259 = sbr.rel (%p257) target = $region16
        $region15: #{tpu_custom_call.1} parent=11 // pred_region
          %261 = vsyncadd [#allocation6], 0
          %s262 = sshll.u32 %s1, 4
          %s263 = int_to_ptr.hbm [resolvable:$true] %s262
          %s264 = sshll.u32 [#allocation5], 4
          %s265 = int_to_ptr.vmem [resolvable:$true] %s264
          %270 = dma.hbm_to_vmem [thread:$0]  %s263, 2048, %s265, [#allocation6], 128, 128, 8
        $region16: #{tpu_custom_call.1} parent=11 // pred_fallthru
          _
        // Predicated region
        $region17: #{tpu_custom_call.1} parent=11 // pred_check
          %p271 = pneg %p90
        $region18: #{tpu_custom_call.1} parent=11 // pred_check_branch
          %273 = sbr.rel (%p271) target = $region20
        $region19: #{tpu_custom_call.1} parent=11 // pred_region
          _
        $region20: #{tpu_custom_call.1} parent=11 // pred_fallthru
          _
        // Predicated region
        $region21: #{tpu_custom_call.1} parent=11 // pred_check
          %p274 = pneg %p111
        $region22: #{tpu_custom_call.1} parent=11 // pred_check_branch
          %276 = sbr.rel (%p274) target = $region24
        $region23: #{tpu_custom_call.1} parent=11 // pred_region
          %278 = vsyncadd [#allocation6], 0
          %s279 = sshll.u32 %s3, 4
          %s280 = int_to_ptr.hbm [resolvable:$true] %s279
          %s281 = sshll.u32 [#allocation7], 4
          %s282 = int_to_ptr.vmem [resolvable:$true] %s281
          %287 = dma.hbm_to_vmem [thread:$0]  %s280, 2048, %s282, [#allocation6], 64, 64, 4
        $region24: #{tpu_custom_call.1} parent=11 // pred_fallthru
          _
        // Predicated region
        $region25: #{tpu_custom_call.1} parent=11 // pred_check
          %p288 = pneg %p132
        $region26: #{tpu_custom_call.1} parent=11 // pred_check_branch
          %290 = sbr.rel (%p288) target = $region28
        $region27: #{tpu_custom_call.1} parent=11 // pred_region
          _
        $region28: #{tpu_custom_call.1} parent=11 // pred_fallthru
          _
        // Predicated region
        $region29: #{tpu_custom_call.1} parent=11 // pred_check
          %p291 = pneg %p153
        $region30: #{tpu_custom_call.1} parent=11 // pred_check_branch
          %293 = sbr.rel (%p291) target = $region32
        $region31: #{tpu_custom_call.1} parent=11 // pred_region
          _
        $region32: #{tpu_custom_call.1} parent=11 // pred_fallthru
          _
        // Predicated region
        $region33: #{tpu_custom_call.1} parent=11 // pred_check
          %p294 = pneg %p174
        $region34: #{tpu_custom_call.1} parent=11 // pred_check_branch
          %296 = sbr.rel (%p294) target = $region36
        $region35: #{tpu_custom_call.1} parent=11 // pred_region
          _
        $region36: #{tpu_custom_call.1} parent=11 // pred_fallthru
          _
        // Predicated region
        $region37: #{tpu_custom_call.1} parent=11 // pred_check
          %p297 = pneg %p195
        $region38: #{tpu_custom_call.1} parent=11 // pred_check_branch
          %299 = sbr.rel (%p297) target = $region40
        $region39: #{tpu_custom_call.1} parent=11 // pred_region
          _
        $region40: #{tpu_custom_call.1} parent=11 // pred_fallthru
          _
        // Predicated region
        $region41: #{tpu_custom_call.1} parent=11 // pred_check
          %p300 = pneg %p216
        $region42: #{tpu_custom_call.1} parent=11 // pred_check_branch
          %302 = sbr.rel (%p300) target = $region44
        $region43: #{tpu_custom_call.1} parent=11 // pred_region
          _
        $region44: #{tpu_custom_call.1} parent=11 // pred_fallthru
          _
      $region12: #{tpu_custom_call.1} parent=5 // pred_fallthru
        _
      %p303 = scmp.lt.s32.totalorder %s22, 2
      // Predicated region
      $region45: #{tpu_custom_call.1} parent=5 // pred_check
        %p304 = pneg %p303
      $region46: #{tpu_custom_call.1} parent=5 // pred_check_branch
        %306 = sbr.rel (%p304) target = $region48
      $region47: #{tpu_custom_call.1} parent=5 // pred_region
        // Predicated region
        $region49: #{tpu_custom_call.1} parent=47 // pred_check
          %p307 = pneg %p42
        $region50: #{tpu_custom_call.1} parent=47 // pred_check_branch
          %309 = sbr.rel (%p307) target = $region52
        $region51: #{tpu_custom_call.1} parent=47 // pred_region
          %s310 = sand.u32 %s32, 1
          %s311 = scalar_lea.sflag [#allocation3], %s310
          %s312 = sand.u32 %s32, 1
          %s313 = smul.addr %s312, 64
          %s314 = scalar_lea.vmem [#allocation2], %s313
          %s315 = smul.u32 16, %s22
          %317 = vsyncadd %s311, 0
          %s318 = smul.addr %s315, 4
          %s319 = scalar_lea.hbm %s0, %s318
          %s320 = sshll.u32 %s319, 4
          %s321 = int_to_ptr.hbm [resolvable:$true] %s320
          %s322 = sshll.u32 %s314, 4
          %s323 = int_to_ptr.vmem [resolvable:$true] %s322
          %328 = dma.hbm_to_vmem [thread:$0]  %s321, 1024, %s323, %s311, 64, 64, 4
        $region52: #{tpu_custom_call.1} parent=47 // pred_fallthru
          _
      $region48: #{tpu_custom_call.1} parent=5 // pred_fallthru
        _
      %p329 = scmp.le.s32.totalorder 1, %s22
      %p330 = scmp.lt.s32.totalorder %s22, 3
      %p331 = pnand %p329, %p330
      %p332 = pneg %p331
      // Predicated region
      $region53: #{tpu_custom_call.1} parent=5 // pred_check
        _
      $region54: #{tpu_custom_call.1} parent=5 // pred_check_branch
        %334 = sbr.rel (%p331) target = $region56
      $region55: #{tpu_custom_call.1} parent=5 // pred_region
        %s335 = ssub.s32 %s22, 1
        %s336 = sand.u32 %s35, 1
        %s337 = scalar_lea.sflag [#allocation3], %s336
        %s338 = sand.u32 %s35, 1
        %s339 = smul.addr %s338, 64
        %s340 = scalar_lea.vmem [#allocation2], %s339
        // Predicated region
        $region57: #{tpu_custom_call.1} parent=55 // pred_check
          %p341 = pneg %p48
        $region58: #{tpu_custom_call.1} parent=55 // pred_check_branch
          %343 = sbr.rel (%p341) target = $region60
        $region59: #{tpu_custom_call.1} parent=55 // pred_region
          %345 = dma.done %s337, 1024
        $region60: #{tpu_custom_call.1} parent=55 // pred_fallthru
          _
        // Predicated region
        $region61: #{tpu_custom_call.1} parent=55 // pred_check
          %p346 = pneg %p69
        $region62: #{tpu_custom_call.1} parent=55 // pred_check_branch
          %348 = sbr.rel (%p346) target = $region64
        $region63: #{tpu_custom_call.1} parent=55 // pred_region
          %350 = dma.done [#allocation6], 2048
        $region64: #{tpu_custom_call.1} parent=55 // pred_fallthru
          _
        // Predicated region
        $region65: #{tpu_custom_call.1} parent=55 // pred_check
          %p351 = pneg %p111
        $region66: #{tpu_custom_call.1} parent=55 // pred_check_branch
          %353 = sbr.rel (%p351) target = $region68
        $region67: #{tpu_custom_call.1} parent=55 // pred_region
          %355 = dma.done [#allocation6], 2048
        $region68: #{tpu_custom_call.1} parent=55 // pred_fallthru
          _
        %s356 = sand.u32 %s35, 1
        %s357 = scalar_lea.sflag [#allocation3], %s356
        %s358 = sand.u32 %s35, 1
        %s359 = smul.addr %s358, 64
        %s360 = scalar_lea.vmem [#allocation2], %s359
        %p361 = pneg %p48
        %p362 = pneg %p45
        %p363 = pneg %p69
        %p364 = pneg %p66
        %p365 = pneg %p90
        %p366 = pneg %p87
        %p367 = pneg %p111
        %p368 = pneg %p108
        %p369 = pneg %p132
        %p370 = pneg %p129
        %p371 = pneg %p153
        %p372 = pneg %p150
        %p373 = pneg %p174
        %p374 = pneg %p171
        %p375 = pneg %p195
        %p376 = pneg %p192
        %p377 = pneg %p216
        %p378 = pneg %p213
        %p379 = pneg %p242
        %p380 = pneg %p239
        %s381 = sand.u32 %s229, 1
        %s382 = scalar_lea.sflag [#allocation4], %s381
        %s383 = sand.u32 %s229, 1
        %s384 = smul.addr %s383, 128
        %s385 = scalar_lea.vmem [#allocation8], %s384
        %s386 = smul.u32 16, %s27
        %s387 = smul.u32 16, %s27
        %v389 = vld [vmem:[%s340] sm:$0xf]
        %v390 = vld [vmem:[%s340 + $0x4] sm:$0xf]
        %v391 = vld [vmem:[%s340 + $0x8] sm:$0xf]
        %v392 = vld [vmem:[%s340 + $0xc] sm:$0xf]
        %v393 = vld [vmem:[%s340 + $0x10] sm:$0xf]
        %v394 = vld [vmem:[%s340 + $0x14] sm:$0xf]
        %v395 = vld [vmem:[%s340 + $0x18] sm:$0xf]
        %v396 = vld [vmem:[%s340 + $0x1c] sm:$0xf]
        %v397 = vld [vmem:[%s340 + $0x20] sm:$0xf]
        %v398 = vld [vmem:[%s340 + $0x24] sm:$0xf]
        %v399 = vld [vmem:[%s340 + $0x28] sm:$0xf]
        %v400 = vld [vmem:[%s340 + $0x2c] sm:$0xf]
        %v401 = vld [vmem:[%s340 + $0x30] sm:$0xf]
        %v402 = vld [vmem:[%s340 + $0x34] sm:$0xf]
        %v403 = vld [vmem:[%s340 + $0x38] sm:$0xf]
        %v404 = vld [vmem:[%s340 + $0x3c] sm:$0xf]
        %v405 = vld [vmem:[#allocation5] sm:$0xff]
        %v406 = vld [vmem:[#allocation5 + $0x8] sm:$0xff]
        %v407 = vld [vmem:[#allocation5 + $0x10] sm:$0xff]
        %v408 = vld [vmem:[#allocation5 + $0x18] sm:$0xff]
        %v409 = vld [vmem:[#allocation5 + $0x20] sm:$0xff]
        %v410 = vld [vmem:[#allocation5 + $0x28] sm:$0xff]
        %v411 = vld [vmem:[#allocation5 + $0x30] sm:$0xff]
        %v412 = vld [vmem:[#allocation5 + $0x38] sm:$0xff]
        %v413 = vld [vmem:[#allocation5 + $0x40] sm:$0xff]
        %v414 = vld [vmem:[#allocation5 + $0x48] sm:$0xff]
        %v415 = vld [vmem:[#allocation5 + $0x50] sm:$0xff]
        %v416 = vld [vmem:[#allocation5 + $0x58] sm:$0xff]
        %v417 = vld [vmem:[#allocation5 + $0x60] sm:$0xff]
        %v418 = vld [vmem:[#allocation5 + $0x68] sm:$0xff]
        %v419 = vld [vmem:[#allocation5 + $0x70] sm:$0xff]
        %v420 = vld [vmem:[#allocation5 + $0x78] sm:$0xff]
        %v421 = vld [vmem:[%s2] sm:$0x3]
        %v423 = vperm.slane %v421, 0
        %v424 = vperm.slane %v421, 1
        %v443 = vunpack.c.l.b16 %v389
        %v444 = vunpack.c.l.b16 %v390
        %v445 = vunpack.c.l.b16 %v391
        %v446 = vunpack.c.l.b16 %v392
        %v447 = vunpack.c.l.b16 %v393
        %v448 = vunpack.c.l.b16 %v394
        %v449 = vunpack.c.l.b16 %v395
        %v450 = vunpack.c.l.b16 %v396
        %v451 = vunpack.c.l.b16 %v397
        %v452 = vunpack.c.l.b16 %v398
        %v453 = vunpack.c.l.b16 %v399
        %v454 = vunpack.c.l.b16 %v400
        %v455 = vunpack.c.l.b16 %v401
        %v456 = vunpack.c.l.b16 %v402
        %v457 = vunpack.c.l.b16 %v403
        %v458 = vunpack.c.l.b16 %v404
        %v459 = vpack.c.b16 %v444, %v443
        %v460 = vpack.c.b16 %v446, %v445
        %v461 = vpack.c.b16 %v448, %v447
        %v462 = vpack.c.b16 %v450, %v449
        %v463 = vpack.c.b16 %v452, %v451
        %v464 = vpack.c.b16 %v454, %v453
        %v465 = vpack.c.b16 %v456, %v455
        %v466 = vpack.c.b16 %v458, %v457
        %v491 = vunpack.c.l.b16 %v405
        %v492 = vunpack.c.h.b16 %v405
        %v493 = vunpack.c.l.b16 %v406
        %v494 = vunpack.c.h.b16 %v406
        %v495 = vunpack.c.l.b16 %v407
        %v496 = vunpack.c.h.b16 %v407
        %v497 = vunpack.c.l.b16 %v408
        %v498 = vunpack.c.h.b16 %v408
        %v499 = vunpack.c.l.b16 %v409
        %v500 = vunpack.c.h.b16 %v409
        %v501 = vunpack.c.l.b16 %v410
        %v502 = vunpack.c.h.b16 %v410
        %v503 = vunpack.c.l.b16 %v411
        %v504 = vunpack.c.h.b16 %v411
        %v505 = vunpack.c.l.b16 %v412
        %v506 = vunpack.c.h.b16 %v412
        %v507 = vunpack.c.l.b16 %v413
        %v508 = vunpack.c.h.b16 %v413
        %v509 = vunpack.c.l.b16 %v414
        %v510 = vunpack.c.h.b16 %v414
        %v511 = vunpack.c.l.b16 %v415
        %v512 = vunpack.c.h.b16 %v415
        %v513 = vunpack.c.l.b16 %v416
        %v514 = vunpack.c.h.b16 %v416
        %v515 = vunpack.c.l.b16 %v417
        %v516 = vunpack.c.h.b16 %v417
        %v517 = vunpack.c.l.b16 %v418
        %v518 = vunpack.c.h.b16 %v418
        %v519 = vunpack.c.l.b16 %v419
        %v520 = vunpack.c.h.b16 %v419
        %v521 = vunpack.c.l.b16 %v420
        %v522 = vunpack.c.h.b16 %v420
        %v523 = vpack.c.b16 %v493, %v491
        %v524 = vpack.c.b16 %v494, %v492
        %v525 = vpack.c.b16 %v497, %v495
        %v526 = vpack.c.b16 %v498, %v496
        %v527 = vpack.c.b16 %v501, %v499
        %v528 = vpack.c.b16 %v502, %v500
        %v529 = vpack.c.b16 %v505, %v503
        %v530 = vpack.c.b16 %v506, %v504
        %v531 = vpack.c.b16 %v509, %v507
        %v532 = vpack.c.b16 %v510, %v508
        %v533 = vpack.c.b16 %v513, %v511
        %v534 = vpack.c.b16 %v514, %v512
        %v535 = vpack.c.b16 %v517, %v515
        %v536 = vpack.c.b16 %v518, %v516
        %v537 = vpack.c.b16 %v521, %v519
        %v538 = vpack.c.b16 %v522, %v520
        %555 = vmatpush.bf16.msra.mxu0 %v537
        %556 = vmatpush.bf16.msra.mxu0 %v535
        %557 = vmatpush.bf16.msra.mxu0 %v533
        %558 = vmatpush.bf16.msra.mxu0 %v531
        %559 = vmatpush.bf16.msra.mxu0 %v529
        %560 = vmatpush.bf16.msra.mxu0 %v527
        %561 = vmatpush.bf16.msra.mxu0 %v525
        %562 = vmatpush.bf16.msra.mxu0 %v523
        %563 = vmatmul.bf16.gmra.mxu0 %v459
        %v564 = vpop.f32.mrf.mxu0
        %v565 = vadd.f32 %v423, %v564
        %v566 = vpop.f32.mrf.mxu0
        %v567 = vadd.f32 %v423, %v566
        %568 = vmatmul.bf16.gmra.mxu0 %v460
        %v569 = vpop.f32.mrf.mxu0
        %v570 = vadd.f32 %v423, %v569
        %v571 = vpop.f32.mrf.mxu0
        %v572 = vadd.f32 %v423, %v571
        %573 = vmatmul.bf16.gmra.mxu0 %v461
        %v574 = vpop.f32.mrf.mxu0
        %v575 = vadd.f32 %v423, %v574
        %v576 = vpop.f32.mrf.mxu0
        %v577 = vadd.f32 %v423, %v576
        %578 = vmatmul.bf16.gmra.mxu0 %v462
        %v579 = vpop.f32.mrf.mxu0
        %v580 = vadd.f32 %v423, %v579
        %v581 = vpop.f32.mrf.mxu0
        %v582 = vadd.f32 %v423, %v581
        %583 = vmatmul.bf16.gmra.mxu0 %v463
        %v584 = vpop.f32.mrf.mxu0
        %v585 = vadd.f32 %v423, %v584
        %v586 = vpop.f32.mrf.mxu0
        %v587 = vadd.f32 %v423, %v586
        %588 = vmatmul.bf16.gmra.mxu0 %v464
        %v589 = vpop.f32.mrf.mxu0
        %v590 = vadd.f32 %v423, %v589
        %v591 = vpop.f32.mrf.mxu0
        %v592 = vadd.f32 %v423, %v591
        %593 = vmatmul.bf16.gmra.mxu0 %v465
        %v594 = vpop.f32.mrf.mxu0
        %v595 = vadd.f32 %v423, %v594
        %v596 = vpop.f32.mrf.mxu0
        %v597 = vadd.f32 %v423, %v596
        %598 = vmatmul.bf16.gmra.mxu0 %v466
        %v599 = vpop.f32.mrf.mxu0
        %v600 = vadd.f32 %v423, %v599
        %v601 = vpop.f32.mrf.mxu0
        %v602 = vadd.f32 %v423, %v601
        %603 = vdwg.mxu0
        %604 = vmatpush.bf16.msra.mxu0 %v538
        %605 = vmatpush.bf16.msra.mxu0 %v536
        %606 = vmatpush.bf16.msra.mxu0 %v534
        %607 = vmatpush.bf16.msra.mxu0 %v532
        %608 = vmatpush.bf16.msra.mxu0 %v530
        %609 = vmatpush.bf16.msra.mxu0 %v528
        %610 = vmatpush.bf16.msra.mxu0 %v526
        %611 = vmatpush.bf16.msra.mxu0 %v524
        %612 = vmatmul.bf16.gmra.mxu0 %v459
        %v613 = vpop.f32.mrf.mxu0
        %v614 = vadd.f32 %v424, %v613
        %v615 = vpop.f32.mrf.mxu0
        %v616 = vadd.f32 %v424, %v615
        %617 = vmatmul.bf16.gmra.mxu0 %v460
        %v618 = vpop.f32.mrf.mxu0
        %v619 = vadd.f32 %v424, %v618
        %v620 = vpop.f32.mrf.mxu0
        %v621 = vadd.f32 %v424, %v620
        %622 = vmatmul.bf16.gmra.mxu0 %v461
        %v623 = vpop.f32.mrf.mxu0
        %v624 = vadd.f32 %v424, %v623
        %v625 = vpop.f32.mrf.mxu0
        %v626 = vadd.f32 %v424, %v625
        %627 = vmatmul.bf16.gmra.mxu0 %v462
        %v628 = vpop.f32.mrf.mxu0
        %v629 = vadd.f32 %v424, %v628
        %v630 = vpop.f32.mrf.mxu0
        %v631 = vadd.f32 %v424, %v630
        %632 = vmatmul.bf16.gmra.mxu0 %v463
        %v633 = vpop.f32.mrf.mxu0
        %v634 = vadd.f32 %v424, %v633
        %v635 = vpop.f32.mrf.mxu0
        %v636 = vadd.f32 %v424, %v635
        %637 = vmatmul.bf16.gmra.mxu0 %v464
        %v638 = vpop.f32.mrf.mxu0
        %v639 = vadd.f32 %v424, %v638
        %v640 = vpop.f32.mrf.mxu0
        %v641 = vadd.f32 %v424, %v640
        %642 = vmatmul.bf16.gmra.mxu0 %v465
        %v643 = vpop.f32.mrf.mxu0
        %v644 = vadd.f32 %v424, %v643
        %v645 = vpop.f32.mrf.mxu0
        %v646 = vadd.f32 %v424, %v645
        %647 = vmatmul.bf16.gmra.mxu0 %v466
        %v648 = vpop.f32.mrf.mxu0
        %v649 = vadd.f32 %v424, %v648
        %v650 = vpop.f32.mrf.mxu0
        %v651 = vadd.f32 %v424, %v650
        %652 = vdwg.mxu0
        %v653 = vmax.f32 %v565, 0.0
        %v654 = vmax.f32 %v614, 0.0
        %v655 = vmax.f32 %v567, 0.0
        %v656 = vmax.f32 %v616, 0.0
        %v657 = vmax.f32 %v570, 0.0
        %v658 = vmax.f32 %v619, 0.0
        %v659 = vmax.f32 %v572, 0.0
        %v660 = vmax.f32 %v621, 0.0
        %v661 = vmax.f32 %v575, 0.0
        %v662 = vmax.f32 %v624, 0.0
        %v663 = vmax.f32 %v577, 0.0
        %v664 = vmax.f32 %v626, 0.0
        %v665 = vmax.f32 %v580, 0.0
        %v666 = vmax.f32 %v629, 0.0
        %v667 = vmax.f32 %v582, 0.0
        %v668 = vmax.f32 %v631, 0.0
        %v669 = vmax.f32 %v585, 0.0
        %v670 = vmax.f32 %v634, 0.0
        %v671 = vmax.f32 %v587, 0.0
        %v672 = vmax.f32 %v636, 0.0
        %v673 = vmax.f32 %v590, 0.0
        %v674 = vmax.f32 %v639, 0.0
        %v675 = vmax.f32 %v592, 0.0
        %v676 = vmax.f32 %v641, 0.0
        %v677 = vmax.f32 %v595, 0.0
        %v678 = vmax.f32 %v644, 0.0
        %v679 = vmax.f32 %v597, 0.0
        %v680 = vmax.f32 %v646, 0.0
        %v681 = vmax.f32 %v600, 0.0
        %v682 = vmax.f32 %v649, 0.0
        %v683 = vmax.f32 %v602, 0.0
        %v684 = vmax.f32 %v651, 0.0
        %v685 = vpack.c.bf16 %v655, %v653
        %v686 = vpack.c.bf16 %v656, %v654
        %v687 = vpack.c.bf16 %v659, %v657
        %v688 = vpack.c.bf16 %v660, %v658
        %v689 = vpack.c.bf16 %v663, %v661
        %v690 = vpack.c.bf16 %v664, %v662
        %v691 = vpack.c.bf16 %v667, %v665
        %v692 = vpack.c.bf16 %v668, %v666
        %v693 = vpack.c.bf16 %v671, %v669
        %v694 = vpack.c.bf16 %v672, %v670
        %v695 = vpack.c.bf16 %v675, %v673
        %v696 = vpack.c.bf16 %v676, %v674
        %v697 = vpack.c.bf16 %v679, %v677
        %v698 = vpack.c.bf16 %v680, %v678
        %v699 = vpack.c.bf16 %v683, %v681
        %v700 = vpack.c.bf16 %v684, %v682
        %v701 = vld [vmem:[#allocation7] sm:$0xf]
        %v702 = vld [vmem:[#allocation7 + $0x4] sm:$0xf]
        %v703 = vld [vmem:[#allocation7 + $0x8] sm:$0xf]
        %v704 = vld [vmem:[#allocation7 + $0xc] sm:$0xf]
        %v705 = vld [vmem:[#allocation7 + $0x10] sm:$0xf]
        %v706 = vld [vmem:[#allocation7 + $0x14] sm:$0xf]
        %v707 = vld [vmem:[#allocation7 + $0x18] sm:$0xf]
        %v708 = vld [vmem:[#allocation7 + $0x1c] sm:$0xf]
        %v709 = vld [vmem:[#allocation7 + $0x20] sm:$0xf]
        %v710 = vld [vmem:[#allocation7 + $0x24] sm:$0xf]
        %v711 = vld [vmem:[#allocation7 + $0x28] sm:$0xf]
        %v712 = vld [vmem:[#allocation7 + $0x2c] sm:$0xf]
        %v713 = vld [vmem:[#allocation7 + $0x30] sm:$0xf]
        %v714 = vld [vmem:[#allocation7 + $0x34] sm:$0xf]
        %v715 = vld [vmem:[#allocation7 + $0x38] sm:$0xf]
        %v716 = vld [vmem:[#allocation7 + $0x3c] sm:$0xf]
        %v717 = vld [vmem:[#allocation7 + $0x40] sm:$0xf]
        %v718 = vld [vmem:[#allocation7 + $0x44] sm:$0xf]
        %v719 = vld [vmem:[#allocation7 + $0x48] sm:$0xf]
        %v720 = vld [vmem:[#allocation7 + $0x4c] sm:$0xf]
        %v721 = vld [vmem:[#allocation7 + $0x50] sm:$0xf]
        %v722 = vld [vmem:[#allocation7 + $0x54] sm:$0xf]
        %v723 = vld [vmem:[#allocation7 + $0x58] sm:$0xf]
        %v724 = vld [vmem:[#allocation7 + $0x5c] sm:$0xf]
        %v725 = vld [vmem:[#allocation7 + $0x60] sm:$0xf]
        %v726 = vld [vmem:[#allocation7 + $0x64] sm:$0xf]
        %v727 = vld [vmem:[#allocation7 + $0x68] sm:$0xf]
        %v728 = vld [vmem:[#allocation7 + $0x6c] sm:$0xf]
        %v729 = vld [vmem:[#allocation7 + $0x70] sm:$0xf]
        %v730 = vld [vmem:[#allocation7 + $0x74] sm:$0xf]
        %v731 = vld [vmem:[#allocation7 + $0x78] sm:$0xf]
        %v732 = vld [vmem:[#allocation7 + $0x7c] sm:$0xf]
        %v733 = vld [vmem:[%s4] sm:$0x1]
        %v735 = vperm.slane %v733, 0
        %v769 = vunpack.c.l.b16 %v701
        %v770 = vunpack.c.l.b16 %v702
        %v771 = vunpack.c.l.b16 %v703
        %v772 = vunpack.c.l.b16 %v704
        %v773 = vunpack.c.l.b16 %v705
        %v774 = vunpack.c.l.b16 %v706
        %v775 = vunpack.c.l.b16 %v707
        %v776 = vunpack.c.l.b16 %v708
        %v777 = vunpack.c.l.b16 %v709
        %v778 = vunpack.c.l.b16 %v710
        %v779 = vunpack.c.l.b16 %v711
        %v780 = vunpack.c.l.b16 %v712
        %v781 = vunpack.c.l.b16 %v713
        %v782 = vunpack.c.l.b16 %v714
        %v783 = vunpack.c.l.b16 %v715
        %v784 = vunpack.c.l.b16 %v716
        %v785 = vunpack.c.l.b16 %v717
        %v786 = vunpack.c.l.b16 %v718
        %v787 = vunpack.c.l.b16 %v719
        %v788 = vunpack.c.l.b16 %v720
        %v789 = vunpack.c.l.b16 %v721
        %v790 = vunpack.c.l.b16 %v722
        %v791 = vunpack.c.l.b16 %v723
        %v792 = vunpack.c.l.b16 %v724
        %v793 = vunpack.c.l.b16 %v725
        %v794 = vunpack.c.l.b16 %v726
        %v795 = vunpack.c.l.b16 %v727
        %v796 = vunpack.c.l.b16 %v728
        %v797 = vunpack.c.l.b16 %v729
        %v798 = vunpack.c.l.b16 %v730
        %v799 = vunpack.c.l.b16 %v731
        %v800 = vunpack.c.l.b16 %v732
        %v801 = vpack.c.b16 %v770, %v769
        %v802 = vpack.c.b16 %v772, %v771
        %v803 = vpack.c.b16 %v774, %v773
        %v804 = vpack.c.b16 %v776, %v775
        %v805 = vpack.c.b16 %v778, %v777
        %v806 = vpack.c.b16 %v780, %v779
        %v807 = vpack.c.b16 %v782, %v781
        %v808 = vpack.c.b16 %v784, %v783
        %v809 = vpack.c.b16 %v786, %v785
        %v810 = vpack.c.b16 %v788, %v787
        %v811 = vpack.c.b16 %v790, %v789
        %v812 = vpack.c.b16 %v792, %v791
        %v813 = vpack.c.b16 %v794, %v793
        %v814 = vpack.c.b16 %v796, %v795
        %v815 = vpack.c.b16 %v798, %v797
        %v816 = vpack.c.b16 %v800, %v799
        %833 = vmatpush.bf16.msra.mxu0 %v808
        %834 = vmatpush.bf16.msra.mxu0 %v807
        %835 = vmatpush.bf16.msra.mxu0 %v806
        %836 = vmatpush.bf16.msra.mxu0 %v805
        %837 = vmatpush.bf16.msra.mxu0 %v804
        %838 = vmatpush.bf16.msra.mxu0 %v803
        %839 = vmatpush.bf16.msra.mxu0 %v802
        %840 = vmatpush.bf16.msra.mxu0 %v801
        %841 = vmatmul.bf16.gmra.mxu0 %v685
        %v842 = vpop.f32.mrf.mxu0
        %v843 = vadd.f32 %v735, %v842
        %v844 = vpop.f32.mrf.mxu0
        %v845 = vadd.f32 %v735, %v844
        %846 = vmatmul.bf16.gmra.mxu0 %v687
        %v847 = vpop.f32.mrf.mxu0
        %v848 = vadd.f32 %v735, %v847
        %v849 = vpop.f32.mrf.mxu0
        %v850 = vadd.f32 %v735, %v849
        %851 = vmatmul.bf16.gmra.mxu0 %v689
        %v852 = vpop.f32.mrf.mxu0
        %v853 = vadd.f32 %v735, %v852
        %v854 = vpop.f32.mrf.mxu0
        %v855 = vadd.f32 %v735, %v854
        %856 = vmatmul.bf16.gmra.mxu0 %v691
        %v857 = vpop.f32.mrf.mxu0
        %v858 = vadd.f32 %v735, %v857
        %v859 = vpop.f32.mrf.mxu0
        %v860 = vadd.f32 %v735, %v859
        %861 = vmatmul.bf16.gmra.mxu0 %v693
        %v862 = vpop.f32.mrf.mxu0
        %v863 = vadd.f32 %v735, %v862
        %v864 = vpop.f32.mrf.mxu0
        %v865 = vadd.f32 %v735, %v864
        %866 = vmatmul.bf16.gmra.mxu0 %v695
        %v867 = vpop.f32.mrf.mxu0
        %v868 = vadd.f32 %v735, %v867
        %v869 = vpop.f32.mrf.mxu0
        %v870 = vadd.f32 %v735, %v869
        %871 = vmatmul.bf16.gmra.mxu0 %v697
        %v872 = vpop.f32.mrf.mxu0
        %v873 = vadd.f32 %v735, %v872
        %v874 = vpop.f32.mrf.mxu0
        %v875 = vadd.f32 %v735, %v874
        %876 = vmatmul.bf16.gmra.mxu0 %v699
        %v877 = vpop.f32.mrf.mxu0
        %v878 = vadd.f32 %v735, %v877
        %v879 = vpop.f32.mrf.mxu0
        %v880 = vadd.f32 %v735, %v879
        %881 = vdwg.mxu0
        %882 = vmatpush.bf16.msra.mxu0 %v816
        %883 = vmatpush.bf16.msra.mxu0 %v815
        %884 = vmatpush.bf16.msra.mxu0 %v814
        %885 = vmatpush.bf16.msra.mxu0 %v813
        %886 = vmatpush.bf16.msra.mxu0 %v812
        %887 = vmatpush.bf16.msra.mxu0 %v811
        %888 = vmatpush.bf16.msra.mxu0 %v810
        %889 = vmatpush.bf16.msra.mxu0 %v809
        %890 = vmatmul.bf16.gmra.mxu0 %v686
        %v891 = vpop.f32.mrf.mxu0
        %v892 = vadd.f32 %v843, %v891
        %v893 = vpop.f32.mrf.mxu0
        %v894 = vadd.f32 %v845, %v893
        %895 = vmatmul.bf16.gmra.mxu0 %v688
        %v896 = vpop.f32.mrf.mxu0
        %v897 = vadd.f32 %v848, %v896
        %v898 = vpop.f32.mrf.mxu0
        %v899 = vadd.f32 %v850, %v898
        %900 = vmatmul.bf16.gmra.mxu0 %v690
        %v901 = vpop.f32.mrf.mxu0
        %v902 = vadd.f32 %v853, %v901
        %v903 = vpop.f32.mrf.mxu0
        %v904 = vadd.f32 %v855, %v903
        %905 = vmatmul.bf16.gmra.mxu0 %v692
        %v906 = vpop.f32.mrf.mxu0
        %v907 = vadd.f32 %v858, %v906
        %v908 = vpop.f32.mrf.mxu0
        %v909 = vadd.f32 %v860, %v908
        %910 = vmatmul.bf16.gmra.mxu0 %v694
        %v911 = vpop.f32.mrf.mxu0
        %v912 = vadd.f32 %v863, %v911
        %v913 = vpop.f32.mrf.mxu0
        %v914 = vadd.f32 %v865, %v913
        %915 = vmatmul.bf16.gmra.mxu0 %v696
        %v916 = vpop.f32.mrf.mxu0
        %v917 = vadd.f32 %v868, %v916
        %v918 = vpop.f32.mrf.mxu0
        %v919 = vadd.f32 %v870, %v918
        %920 = vmatmul.bf16.gmra.mxu0 %v698
        %v921 = vpop.f32.mrf.mxu0
        %v922 = vadd.f32 %v873, %v921
        %v923 = vpop.f32.mrf.mxu0
        %v924 = vadd.f32 %v875, %v923
        %925 = vmatmul.bf16.gmra.mxu0 %v700
        %v926 = vpop.f32.mrf.mxu0
        %v927 = vadd.f32 %v878, %v926
        %v928 = vpop.f32.mrf.mxu0
        %v929 = vadd.f32 %v880, %v928
        %930 = vdwg.mxu0
        %v931 = vmax.f32 %v892, 0.0
        %v932 = vmax.f32 %v894, 0.0
        %v933 = vmax.f32 %v897, 0.0
        %v934 = vmax.f32 %v899, 0.0
        %v935 = vmax.f32 %v902, 0.0
        %v936 = vmax.f32 %v904, 0.0
        %v937 = vmax.f32 %v907, 0.0
        %v938 = vmax.f32 %v909, 0.0
        %v939 = vmax.f32 %v912, 0.0
        %v940 = vmax.f32 %v914, 0.0
        %v941 = vmax.f32 %v917, 0.0
        %v942 = vmax.f32 %v919, 0.0
        %v943 = vmax.f32 %v922, 0.0
        %v944 = vmax.f32 %v924, 0.0
        %v945 = vmax.f32 %v927, 0.0
        %v946 = vmax.f32 %v929, 0.0
        %v947 = vpack.c.bf16 %v932, %v931
        %v948 = vpack.c.bf16 %v934, %v933
        %v949 = vpack.c.bf16 %v936, %v935
        %v950 = vpack.c.bf16 %v938, %v937
        %v951 = vpack.c.bf16 %v940, %v939
        %v952 = vpack.c.bf16 %v942, %v941
        %v953 = vpack.c.bf16 %v944, %v943
        %v954 = vpack.c.bf16 %v946, %v945
        %v955 = vld [vmem:[%s5] sm:$0xf]
        %v956 = vld [vmem:[%s5 + $0x4] sm:$0xf]
        %v957 = vld [vmem:[%s5 + $0x8] sm:$0xf]
        %v958 = vld [vmem:[%s5 + $0xc] sm:$0xf]
        %v959 = vld [vmem:[%s5 + $0x10] sm:$0xf]
        %v960 = vld [vmem:[%s5 + $0x14] sm:$0xf]
        %v961 = vld [vmem:[%s5 + $0x18] sm:$0xf]
        %v962 = vld [vmem:[%s5 + $0x1c] sm:$0xf]
        %v963 = vld [vmem:[%s5 + $0x20] sm:$0xf]
        %v964 = vld [vmem:[%s5 + $0x24] sm:$0xf]
        %v965 = vld [vmem:[%s5 + $0x28] sm:$0xf]
        %v966 = vld [vmem:[%s5 + $0x2c] sm:$0xf]
        %v967 = vld [vmem:[%s5 + $0x30] sm:$0xf]
        %v968 = vld [vmem:[%s5 + $0x34] sm:$0xf]
        %v969 = vld [vmem:[%s5 + $0x38] sm:$0xf]
        %v970 = vld [vmem:[%s5 + $0x3c] sm:$0xf]
        %v971 = vld [vmem:[%s6] sm:$0x1]
        %v973 = vperm.slane %v971, 0
        %v991 = vunpack.c.l.b16 %v955
        %v992 = vunpack.c.l.b16 %v956
        %v993 = vunpack.c.l.b16 %v957
        %v994 = vunpack.c.l.b16 %v958
        %v995 = vunpack.c.l.b16 %v959
        %v996 = vunpack.c.l.b16 %v960
        %v997 = vunpack.c.l.b16 %v961
        %v998 = vunpack.c.l.b16 %v962
        %v999 = vunpack.c.l.b16 %v963
        %v1000 = vunpack.c.l.b16 %v964
        %v1001 = vunpack.c.l.b16 %v965
        %v1002 = vunpack.c.l.b16 %v966
        %v1003 = vunpack.c.l.b16 %v967
        %v1004 = vunpack.c.l.b16 %v968
        %v1005 = vunpack.c.l.b16 %v969
        %v1006 = vunpack.c.l.b16 %v970
        %v1007 = vpack.c.b16 %v992, %v991
        %v1008 = vpack.c.b16 %v994, %v993
        %v1009 = vpack.c.b16 %v996, %v995
        %v1010 = vpack.c.b16 %v998, %v997
        %v1011 = vpack.c.b16 %v1000, %v999
        %v1012 = vpack.c.b16 %v1002, %v1001
        %v1013 = vpack.c.b16 %v1004, %v1003
        %v1014 = vpack.c.b16 %v1006, %v1005
        %1023 = vmatpush.bf16.msra.mxu0 %v1014
        %1024 = vmatpush.bf16.msra.mxu0 %v1013
        %1025 = vmatpush.bf16.msra.mxu0 %v1012
        %1026 = vmatpush.bf16.msra.mxu0 %v1011
        %1027 = vmatpush.bf16.msra.mxu0 %v1010
        %1028 = vmatpush.bf16.msra.mxu0 %v1009
        %1029 = vmatpush.bf16.msra.mxu0 %v1008
        %1030 = vmatpush.bf16.msra.mxu0 %v1007
        %1031 = vmatmul.bf16.gmra.mxu0 %v947
        %v1032 = vpop.f32.mrf.mxu0
        %v1033 = vadd.f32 %v973, %v1032
        %v1034 = vpop.f32.mrf.mxu0
        %v1035 = vadd.f32 %v973, %v1034
        %1036 = vmatmul.bf16.gmra.mxu0 %v948
        %v1037 = vpop.f32.mrf.mxu0
        %v1038 = vadd.f32 %v973, %v1037
        %v1039 = vpop.f32.mrf.mxu0
        %v1040 = vadd.f32 %v973, %v1039
        %1041 = vmatmul.bf16.gmra.mxu0 %v949
        %v1042 = vpop.f32.mrf.mxu0
        %v1043 = vadd.f32 %v973, %v1042
        %v1044 = vpop.f32.mrf.mxu0
        %v1045 = vadd.f32 %v973, %v1044
        %1046 = vmatmul.bf16.gmra.mxu0 %v950
        %v1047 = vpop.f32.mrf.mxu0
        %v1048 = vadd.f32 %v973, %v1047
        %v1049 = vpop.f32.mrf.mxu0
        %v1050 = vadd.f32 %v973, %v1049
        %1051 = vmatmul.bf16.gmra.mxu0 %v951
        %v1052 = vpop.f32.mrf.mxu0
        %v1053 = vadd.f32 %v973, %v1052
        %v1054 = vpop.f32.mrf.mxu0
        %v1055 = vadd.f32 %v973, %v1054
        %1056 = vmatmul.bf16.gmra.mxu0 %v952
        %v1057 = vpop.f32.mrf.mxu0
        %v1058 = vadd.f32 %v973, %v1057
        %v1059 = vpop.f32.mrf.mxu0
        %v1060 = vadd.f32 %v973, %v1059
        %1061 = vmatmul.bf16.gmra.mxu0 %v953
        %v1062 = vpop.f32.mrf.mxu0
        %v1063 = vadd.f32 %v973, %v1062
        %v1064 = vpop.f32.mrf.mxu0
        %v1065 = vadd.f32 %v973, %v1064
        %1066 = vmatmul.bf16.gmra.mxu0 %v954
        %v1067 = vpop.f32.mrf.mxu0
        %v1068 = vadd.f32 %v973, %v1067
        %v1069 = vpop.f32.mrf.mxu0
        %v1070 = vadd.f32 %v973, %v1069
        %1071 = vdwg.mxu0
        %v1072 = vmax.f32 %v1033, 0.0
        %v1073 = vmax.f32 %v1035, 0.0
        %v1074 = vmax.f32 %v1038, 0.0
        %v1075 = vmax.f32 %v1040, 0.0
        %v1076 = vmax.f32 %v1043, 0.0
        %v1077 = vmax.f32 %v1045, 0.0
        %v1078 = vmax.f32 %v1048, 0.0
        %v1079 = vmax.f32 %v1050, 0.0
        %v1080 = vmax.f32 %v1053, 0.0
        %v1081 = vmax.f32 %v1055, 0.0
        %v1082 = vmax.f32 %v1058, 0.0
        %v1083 = vmax.f32 %v1060, 0.0
        %v1084 = vmax.f32 %v1063, 0.0
        %v1085 = vmax.f32 %v1065, 0.0
        %v1086 = vmax.f32 %v1068, 0.0
        %v1087 = vmax.f32 %v1070, 0.0
        %v1088 = vpack.c.bf16 %v1073, %v1072
        %v1089 = vpack.c.bf16 %v1075, %v1074
        %v1090 = vpack.c.bf16 %v1077, %v1076
        %v1091 = vpack.c.bf16 %v1079, %v1078
        %v1092 = vpack.c.bf16 %v1081, %v1080
        %v1093 = vpack.c.bf16 %v1083, %v1082
        %v1094 = vpack.c.bf16 %v1085, %v1084
        %v1095 = vpack.c.bf16 %v1087, %v1086
        %v1096 = vld [vmem:[%s7] sm:$0xf]
        %v1097 = vld [vmem:[%s7 + $0x4] sm:$0xf]
        %v1098 = vld [vmem:[%s7 + $0x8] sm:$0xf]
        %v1099 = vld [vmem:[%s7 + $0xc] sm:$0xf]
        %v1100 = vld [vmem:[%s7 + $0x10] sm:$0xf]
        %v1101 = vld [vmem:[%s7 + $0x14] sm:$0xf]
        %v1102 = vld [vmem:[%s7 + $0x18] sm:$0xf]
        %v1103 = vld [vmem:[%s7 + $0x1c] sm:$0xf]
        %v1104 = vld [vmem:[%s8] sm:$0x1]
        %v1106 = vperm.slane %v1104, 0
        %v1116 = vunpack.c.l.b16 %v1096
        %v1117 = vunpack.c.l.b16 %v1097
        %v1118 = vunpack.c.l.b16 %v1098
        %v1119 = vunpack.c.l.b16 %v1099
        %v1120 = vunpack.c.l.b16 %v1100
        %v1121 = vunpack.c.l.b16 %v1101
        %v1122 = vunpack.c.l.b16 %v1102
        %v1123 = vunpack.c.l.b16 %v1103
        %v1124 = vpack.c.b16 %v1117, %v1116
        %v1125 = vpack.c.b16 %v1119, %v1118
        %v1126 = vpack.c.b16 %v1121, %v1120
        %v1127 = vpack.c.b16 %v1123, %v1122
        %vm1132 = vcmask 523264
        %v1134 = vsel %vm1132, %v1088, 0
        %v1137 = vsel %vm1132, %v1089, 0
        %v1140 = vsel %vm1132, %v1090, 0
        %v1143 = vsel %vm1132, %v1091, 0
        %v1146 = vsel %vm1132, %v1092, 0
        %v1149 = vsel %vm1132, %v1093, 0
        %v1152 = vsel %vm1132, %v1094, 0
        %v1155 = vsel %vm1132, %v1095, 0
        %1157 = vmatpush.bf16.msra.mxu0 0
        %1158 = vmatpush.bf16.msra.mxu0 0
        %1159 = vmatpush.bf16.msra.mxu0 0
        %1160 = vmatpush.bf16.msra.mxu0 0
        %1161 = vmatpush.bf16.msra.mxu0 %v1127
        %1162 = vmatpush.bf16.msra.mxu0 %v1126
        %1163 = vmatpush.bf16.msra.mxu0 %v1125
        %1164 = vmatpush.bf16.msra.mxu0 %v1124
        %1165 = vmatmul.bf16.gmra.mxu0 %v1134
        %v1166 = vpop.f32.mrf.mxu0
        %v1167 = vadd.f32 %v1106, %v1166
        %v1168 = vpop.f32.mrf.mxu0
        %v1169 = vadd.f32 %v1106, %v1168
        %1170 = vmatmul.bf16.gmra.mxu0 %v1137
        %v1171 = vpop.f32.mrf.mxu0
        %v1172 = vadd.f32 %v1106, %v1171
        %v1173 = vpop.f32.mrf.mxu0
        %v1174 = vadd.f32 %v1106, %v1173
        %1175 = vmatmul.bf16.gmra.mxu0 %v1140
        %v1176 = vpop.f32.mrf.mxu0
        %v1177 = vadd.f32 %v1106, %v1176
        %v1178 = vpop.f32.mrf.mxu0
        %v1179 = vadd.f32 %v1106, %v1178
        %1180 = vmatmul.bf16.gmra.mxu0 %v1143
        %v1181 = vpop.f32.mrf.mxu0
        %v1182 = vadd.f32 %v1106, %v1181
        %v1183 = vpop.f32.mrf.mxu0
        %v1184 = vadd.f32 %v1106, %v1183
        %1185 = vmatmul.bf16.gmra.mxu0 %v1146
        %v1186 = vpop.f32.mrf.mxu0
        %v1187 = vadd.f32 %v1106, %v1186
        %v1188 = vpop.f32.mrf.mxu0
        %v1189 = vadd.f32 %v1106, %v1188
        %1190 = vmatmul.bf16.gmra.mxu0 %v1149
        %v1191 = vpop.f32.mrf.mxu0
        %v1192 = vadd.f32 %v1106, %v1191
        %v1193 = vpop.f32.mrf.mxu0
        %v1194 = vadd.f32 %v1106, %v1193
        %1195 = vmatmul.bf16.gmra.mxu0 %v1152
        %v1196 = vpop.f32.mrf.mxu0
        %v1197 = vadd.f32 %v1106, %v1196
        %v1198 = vpop.f32.mrf.mxu0
        %v1199 = vadd.f32 %v1106, %v1198
        %1200 = vmatmul.bf16.gmra.mxu0 %v1155
        %v1201 = vpop.f32.mrf.mxu0
        %v1202 = vadd.f32 %v1106, %v1201
        %v1203 = vpop.f32.mrf.mxu0
        %v1204 = vadd.f32 %v1106, %v1203
        %1205 = vdwg.mxu0
        %1206 = vst [vmem:[%s385] sm:$0xff] %v1167
        %1207 = vst [vmem:[%s385 + $0x8] sm:$0xff] %v1169
        %1208 = vst [vmem:[%s385 + $0x10] sm:$0xff] %v1172
        %1209 = vst [vmem:[%s385 + $0x18] sm:$0xff] %v1174
        %1210 = vst [vmem:[%s385 + $0x20] sm:$0xff] %v1177
        %1211 = vst [vmem:[%s385 + $0x28] sm:$0xff] %v1179
        %1212 = vst [vmem:[%s385 + $0x30] sm:$0xff] %v1182
        %1213 = vst [vmem:[%s385 + $0x38] sm:$0xff] %v1184
        %1214 = vst [vmem:[%s385 + $0x40] sm:$0xff] %v1187
        %1215 = vst [vmem:[%s385 + $0x48] sm:$0xff] %v1189
        %1216 = vst [vmem:[%s385 + $0x50] sm:$0xff] %v1192
        %1217 = vst [vmem:[%s385 + $0x58] sm:$0xff] %v1194
        %1218 = vst [vmem:[%s385 + $0x60] sm:$0xff] %v1197
        %1219 = vst [vmem:[%s385 + $0x68] sm:$0xff] %v1199
        %1220 = vst [vmem:[%s385 + $0x70] sm:$0xff] %v1202
        %1221 = vst [vmem:[%s385 + $0x78] sm:$0xff] %v1204
        %s1222 = sand.u32 %s229, 1
        %s1223 = scalar_lea.sflag [#allocation4], %s1222
        %s1224 = sand.u32 %s229, 1
        %s1225 = smul.addr %s1224, 128
        %s1226 = scalar_lea.vmem [#allocation8], %s1225
        // Predicated region
        $region69: #{tpu_custom_call.1} parent=55 // pred_check
          %p1227 = pneg %p239
        $region70: #{tpu_custom_call.1} parent=55 // pred_check_branch
          %1229 = sbr.rel (%p1227) target = $region72
        $region71: #{tpu_custom_call.1} parent=55 // pred_region
          %s1230 = smul.u32 16, %s27
          %1232 = vsyncadd %s1223, 0
          %s1233 = smul.addr %s1230, 8
          %s1234 = scalar_lea.hbm %s9, %s1233
          %s1235 = sshll.u32 %s1226, 4
          %s1236 = int_to_ptr.vmem [resolvable:$true] %s1235
          %s1237 = sshll.u32 %s1234, 4
          %s1238 = int_to_ptr.hbm [resolvable:$true] %s1237
          %1243 = dma.vmem_to_hbm [thread:$0]  %s1236, 2048, %s1238, %s1223, 128, 128, 8
        $region72: #{tpu_custom_call.1} parent=55 // pred_fallthru
          _
      $region56: #{tpu_custom_call.1} parent=5 // pred_fallthru
        _
      %p1244 = scmp.le.s32.totalorder 2, %s22
      // Predicated region
      $region73: #{tpu_custom_call.1} parent=5 // pred_check
        %p1245 = pneg %p1244
      $region74: #{tpu_custom_call.1} parent=5 // pred_check_branch
        %1247 = sbr.rel (%p1245) target = $region76
      $region75: #{tpu_custom_call.1} parent=5 // pred_region
        %s1248 = ssub.s32 %s22, 2
        // Predicated region
        $region77: #{tpu_custom_call.1} parent=75 // pred_check
          %p1249 = pneg %p245
        $region78: #{tpu_custom_call.1} parent=75 // pred_check_branch
          %1251 = sbr.rel (%p1249) target = $region80
        $region79: #{tpu_custom_call.1} parent=75 // pred_region
          %s1252 = sand.u32 %s230, 1
          %s1253 = scalar_lea.sflag [#allocation4], %s1252
          %s1254 = sand.u32 %s230, 1
          %s1255 = smul.addr %s1254, 128
          %s1256 = scalar_lea.vmem [#allocation8], %s1255
          %1258 = dma.done %s1253, 2048
        $region80: #{tpu_custom_call.1} parent=75 // pred_fallthru
          _
      $region76: #{tpu_custom_call.1} parent=5 // pred_fallthru
        _
    $region6: #{tpu_custom_call.1} parent=1 // loop_footer
      %s26 = sadd.s32 1, %s22
    $region7: #{tpu_custom_call.1} parent=1 // loop_footer_branch
      %21 = sbr.rel target = $region3
    $region8: #{tpu_custom_call.1} parent=1 // loop_exit
      _
    %1259 = vsyncpa [#allocation3], 1
    %s1260 = scalar_lea.sflag [#allocation3], 1
    %1261 = vsyncpa %s1260, 1
    %1262 = vsyncpa [#allocation6], 1
    %1263 = vsyncpa [#allocation4], 1
    %s1264 = scalar_lea.sflag [#allocation4], 1
    %1265 = vsyncpa %s1264, 1

</llo_original>
